<compile_context>
chip_gen: v7x
topology: tpu7x:2x2x1
jax: 0.10.0
libtpu: 0.0.40
codegen_flags: <defaults>
</compile_context>

<pallas_src>
import functools

import jax
import jax.numpy as jnp
from jax.experimental import pallas as pl
from jax.experimental.pallas import tpu as pltpu

_HEAD = (0, 1, 2, 3, 4)
_SHOULDER = (5, 6)
_ELBOW = (7, 8)
_WRIST = (9, 10)
_HIP = (11, 12)
_KNEE = (13, 14)
_ANKLE = (15, 16)
_PARTS = (_HEAD, _SHOULDER, _ELBOW, _WRIST, _HIP, _KNEE, _ANKLE)


# --------------------------------------------------------------------------
# Pallas kernel
# --------------------------------------------------------------------------
def _divid_part_kernel(x_ref, ma_ref, mi_ref, *, parts, align_idx):
    """x_ref: (BN, S, V) float — channel 1 of the poses (selected by BlockSpec).
    ma_ref / mi_ref: (P, BN) int32 outputs (one dense store each)."""
    bn, S, V = x_ref.shape
    P = len(parts)
    a_i, b_i = align_idx

    x = x_ref[...].astype(jnp.float32)                       # (BN, S, V)

    # ---------------- Aligh (batched over the whole block) ----------------
    p = x - x[:, :, 0:1]                                     # subtract root joint
    ratio = (p[:, :, a_i:a_i + 1] + p[:, :, b_i:b_i + 1]) * 0.5
    # exact division (not reciprocal*mul) to keep ceil/floor bit-identical
    p = p / ratio
    p = p - jnp.min(p, axis=2, keepdims=True)                # per-frame min -> 0

    # ---- per-joint extrema over frames, then global per-sample range -----
    jmax = jnp.max(p, axis=1)[None, :, :]                    # (1, BN, V)
    jmin = jnp.min(p, axis=1)[None, :, :]                    # (1, BN, V)
    bottom = jnp.max(jmax, axis=2)                           # (1, BN)
    top = jnp.min(jmin, axis=2)                              # (1, BN)
    denom = bottom - top                                     # (1, BN)

    # ---- part-membership mask (P, 1, V), built from >=2D iotas only ------
    pk = jax.lax.broadcasted_iota(jnp.int32, (P, 1, V), 0)
    vj = jax.lax.broadcasted_iota(jnp.int32, (P, 1, V), 2)
    mask = None
    for k, idxs in enumerate(parts):
        sel = None
        for j in idxs:
            eq = vj == j
            sel = eq if sel is None else (sel | eq)
        mk = (pk == k) & sel
        mask = mk if mask is None else (mask | mk)

    # ---- two masked reductions give all parts x all samples at once ------
    pmax = jnp.max(jnp.where(mask, jmax, -jnp.inf), axis=2)  # (P, BN)
    pmin = jnp.min(jnp.where(mask, jmin, jnp.inf), axis=2)   # (P, BN)

    ma = jnp.ceil((pmax - top) / denom * 64.0).astype(jnp.int32)   # (P, BN)
    mi = jnp.floor((pmin - top) / denom * 64.0).astype(jnp.int32)  # (P, BN)

    # ---- fix-ups: vectorized equivalent of the torch.nonzero loops -------
    rows = jax.lax.broadcasted_iota(jnp.int32, (P, bn), 0)
    fix_ma = (rows + 1) * 9
    fix_mi = rows * 9
    bad = (ma <= mi) | ((ma - mi) > 30)

    # single lane-dense store per output
    ma_ref[...] = jnp.where(bad, fix_ma, ma)
    mi_ref[...] = jnp.where(bad, fix_mi, mi)


# --------------------------------------------------------------------------
# Wrapper
# --------------------------------------------------------------------------
def divid_part_pallas(poses, *, if_ou=False, parts=_PARTS, batch_block=None):
    """poses: (N, C, S, V) float.  Returns (ma, mi): int32 arrays of shape (7, N).

    batch_block: optional batch tile.  Default None keeps grid=(1,) (best on
    single-TensorCore v5e/v6e and for small N).  For very large N on v7x, pass
    a multiple of 128 that divides N to shard the batch across both cores.
    """
    N, C, S, V = poses.shape
    assert C >= 2, "DividPart reads channel index 1"
    max_joint = max(max(p) for p in parts)
    assert V > max_joint, f"need at least {max_joint + 1} joints, got {V}"
    align_idx = (2, 5) if if_ou else (5, 6)
    nparts = len(parts)

    bn = N if batch_block is None else batch_block
    assert N % bn == 0, "batch_block must divide N"
    if bn != N:
        assert bn % 128 == 0, "partial batch blocks must be lane-aligned (x128)"
    grid = (N // bn,)

    kernel = functools.partial(
        _divid_part_kernel,
        parts=tuple(tuple(p) for p in parts),
        align_idx=align_idx,
    )

    out_shape = (jax.ShapeDtypeStruct((nparts, N), jnp.int32),
                 jax.ShapeDtypeStruct((nparts, N), jnp.int32))
    out_spec = pl.BlockSpec((nparts, bn), lambda i: (0, i))
    # Channel axis is squeezed; its (block-size-1) index 1 selects channel 1,
    # so the other channels never leave HBM.
    in_spec = pl.BlockSpec((bn, None, S, V), lambda i: (i, 1, 0, 0))

    return pl.pallas_call(
        kernel,
        out_shape=out_shape,
        grid=grid,
        in_specs=[in_spec],
        out_specs=(out_spec, out_spec),
        compiler_params=pltpu.CompilerParams(dimension_semantics=("parallel",)),
    )(poses)


# --------------------------------------------------------------------------
# Pure-JAX reference (mirrors the PyTorch module; correctness check only)
# --------------------------------------------------------------------------
def divid_part_ref(poses, if_ou=False, parts=_PARTS):
    pose = poses[:, 1, :, :].astype(jnp.float32)           # (n, s, v)
    pose = pose - pose[:, :, 0:1]
    sh = (2, 5) if if_ou else (5, 6)
    ratio = jnp.mean(pose[:, :, jnp.array(sh)], axis=-1, keepdims=True)
    pose = pose / ratio
    pose = pose - jnp.min(pose, axis=-1, keepdims=True)

    bottom = jnp.max(jnp.max(pose, axis=1), axis=1)        # (n,)
    top = jnp.min(jnp.min(pose, axis=1), axis=1)

    ma_rows, mi_rows = [], []
    for idxs in parts:
        part = pose[:, :, jnp.array(idxs)]
        pmax = jnp.max(jnp.max(part, axis=1), axis=1)
        pmin = jnp.min(jnp.min(part, axis=1), axis=1)
        ma_rows.append(jnp.ceil((pmax - top) / (bottom - top) * 64.0).astype(jnp.int32))
        mi_rows.append(jnp.floor((pmin - top) / (bottom - top) * 64.0).astype(jnp.int32))
    ma = jnp.stack(ma_rows, axis=0)                         # (7, n)
    mi = jnp.stack(mi_rows, axis=0)

    rows = jnp.arange(len(parts), dtype=jnp.int32)[:, None]
    fix_ma = (rows + 1) * 9
    fix_mi = rows * 9
    bad = ma <= mi
    ma = jnp.where(bad, fix_ma, ma)
    mi = jnp.where(bad, fix_mi, mi)
    bad = (ma - mi) > 30
    ma = jnp.where(bad, fix_ma, ma)
    mi = jnp.where(bad, fix_mi, mi)
    return ma, mi


# --------------------------------------------------------------------------
if __name__ == "__main__":
    key = jax.random.PRNGKey(0)
    N, C, S, V = 2, 4, 16, 17          # batch, channels, frames, joints (COCO-17)
    poses = jax.random.normal(key, (N, C, S, V), dtype=jnp.float32)

    ma, mi = divid_part_pallas(poses)
    ma = jax.block_until_ready(ma)
    mi = jax.block_until_ready(mi)

    ma_r, mi_r = divid_part_ref(poses)
    assert ma.shape == (7, N) and mi.shape == (7, N), (ma.shape, mi.shape)
    assert ma.dtype == jnp.int32 and mi.dtype == jnp.int32
    assert bool(jnp.all(ma == ma_r)), (ma, ma_r)
    assert bool(jnp.all(mi == mi_r)), (mi, mi_r)
    print("KERNEL_OK")
</pallas_src>

<mosaic_0001>
module attributes {stable_mosaic.version = 11 : i64} {
  func.func @_divid_part_kernel(%arg0: i32, %arg1: memref<2x1x16x17xf32, #tpu.memory_space<vmem>>, %arg2: memref<7x2xi32, #tpu.memory_space<vmem>>, %arg3: memref<7x2xi32, #tpu.memory_space<vmem>>) attributes {dimension_semantics = [#tpu.dimension_semantics<parallel>], iteration_bounds = array<i64: 1>, scalar_prefetch = 0 : i64, scratch_operands = 0 : i64, tpu.core_type = #tpu.core_type<tc>, window_params = [{transform_indices = @transform_0, window_bounds = array<i64: 2, 1, 16, 17>}, {transform_indices = @transform_1, window_bounds = array<i64: 7, 2>}, {transform_indices = @transform_2, window_bounds = array<i64: 7, 2>}]} {
    %c0 = arith.constant 0 : index
    %c0_0 = arith.constant 0 : index
    %c0_1 = arith.constant 0 : index
    %c0_2 = arith.constant 0 : index
    %0 = vector.load %arg1[%c0, %c0_0, %c0_1, %c0_2] : memref<2x1x16x17xf32, #tpu.memory_space<vmem>>, vector<2x1x16x17xf32>
    %1 = vector.shape_cast %0 : vector<2x1x16x17xf32> to vector<2x16x17xf32>
    %2 = vector.extract_strided_slice %1 {offsets = [0, 0, 0], sizes = [2, 16, 1], strides = [1, 1, 1]} : vector<2x16x17xf32> to vector<2x16x1xf32>
    %3 = vector.broadcast %2 : vector<2x16x1xf32> to vector<2x16x17xf32>
    %4 = arith.subf %1, %3 : vector<2x16x17xf32>
    %5 = vector.extract_strided_slice %4 {offsets = [0, 0, 5], sizes = [2, 16, 1], strides = [1, 1, 1]} : vector<2x16x17xf32> to vector<2x16x1xf32>
    %6 = vector.extract_strided_slice %4 {offsets = [0, 0, 6], sizes = [2, 16, 1], strides = [1, 1, 1]} : vector<2x16x17xf32> to vector<2x16x1xf32>
    %7 = arith.addf %5, %6 : vector<2x16x1xf32>
    %cst = arith.constant 5.000000e-01 : f32
    %8 = vector.broadcast %cst : f32 to vector<2x16x1xf32>
    %9 = arith.mulf %7, %8 : vector<2x16x1xf32>
    %10 = vector.broadcast %9 : vector<2x16x1xf32> to vector<2x16x17xf32>
    %11 = arith.divf %4, %10 : vector<2x16x17xf32>
    %cst_3 = arith.constant dense<0x7F800000> : vector<2x16xf32>
    %12 = vector.multi_reduction <minimumf>, %11, %cst_3 [2] : vector<2x16x17xf32> to vector<2x16xf32>
    %13 = vector.shape_cast %12 : vector<2x16xf32> to vector<2x16x1xf32>
    %14 = vector.broadcast %13 : vector<2x16x1xf32> to vector<2x16x17xf32>
    %15 = arith.subf %11, %14 : vector<2x16x17xf32>
    %cst_4 = arith.constant dense<0xFF800000> : vector<2x17xf32>
    %16 = vector.multi_reduction <maximumf>, %15, %cst_4 [1] : vector<2x16x17xf32> to vector<2x17xf32>
    %17 = vector.shape_cast %16 : vector<2x17xf32> to vector<1x2x17xf32>
    %cst_5 = arith.constant dense<0x7F800000> : vector<2x17xf32>
    %18 = vector.multi_reduction <minimumf>, %15, %cst_5 [1] : vector<2x16x17xf32> to vector<2x17xf32>
    %19 = vector.shape_cast %18 : vector<2x17xf32> to vector<1x2x17xf32>
    %cst_6 = arith.constant dense<0xFF800000> : vector<1x2xf32>
    %20 = vector.multi_reduction <maximumf>, %17, %cst_6 [2] : vector<1x2x17xf32> to vector<1x2xf32>
    %cst_7 = arith.constant dense<0x7F800000> : vector<1x2xf32>
    %21 = vector.multi_reduction <minimumf>, %19, %cst_7 [2] : vector<1x2x17xf32> to vector<1x2xf32>
    %22 = arith.subf %20, %21 : vector<1x2xf32>
    %23 = tpu.iota {dimensions = array<i32: 0>} : vector<7x1x17xi32>
    %24 = tpu.iota {dimensions = array<i32: 2>} : vector<7x1x17xi32>
    %c0_i32 = arith.constant 0 : i32
    %25 = vector.broadcast %c0_i32 : i32 to vector<7x1x17xi32>
    %26 = arith.cmpi eq, %24, %25 : vector<7x1x17xi32>
    %c1_i32 = arith.constant 1 : i32
    %27 = vector.broadcast %c1_i32 : i32 to vector<7x1x17xi32>
    %28 = arith.cmpi eq, %24, %27 : vector<7x1x17xi32>
    %29 = arith.ori %26, %28 : vector<7x1x17xi1>
    %c2_i32 = arith.constant 2 : i32
    %30 = vector.broadcast %c2_i32 : i32 to vector<7x1x17xi32>
    %31 = arith.cmpi eq, %24, %30 : vector<7x1x17xi32>
    %32 = arith.ori %29, %31 : vector<7x1x17xi1>
    %c3_i32 = arith.constant 3 : i32
    %33 = vector.broadcast %c3_i32 : i32 to vector<7x1x17xi32>
    %34 = arith.cmpi eq, %24, %33 : vector<7x1x17xi32>
    %35 = arith.ori %32, %34 : vector<7x1x17xi1>
    %c4_i32 = arith.constant 4 : i32
    %36 = vector.broadcast %c4_i32 : i32 to vector<7x1x17xi32>
    %37 = arith.cmpi eq, %24, %36 : vector<7x1x17xi32>
    %38 = arith.ori %35, %37 : vector<7x1x17xi1>
    %c0_i32_8 = arith.constant 0 : i32
    %39 = vector.broadcast %c0_i32_8 : i32 to vector<7x1x17xi32>
    %40 = arith.cmpi eq, %23, %39 : vector<7x1x17xi32>
    %41 = arith.andi %40, %38 : vector<7x1x17xi1>
    %c5_i32 = arith.constant 5 : i32
    %42 = vector.broadcast %c5_i32 : i32 to vector<7x1x17xi32>
    %43 = arith.cmpi eq, %24, %42 : vector<7x1x17xi32>
    %c6_i32 = arith.constant 6 : i32
    %44 = vector.broadcast %c6_i32 : i32 to vector<7x1x17xi32>
    %45 = arith.cmpi eq, %24, %44 : vector<7x1x17xi32>
    %46 = arith.ori %43, %45 : vector<7x1x17xi1>
    %c1_i32_9 = arith.constant 1 : i32
    %47 = vector.broadcast %c1_i32_9 : i32 to vector<7x1x17xi32>
    %48 = arith.cmpi eq, %23, %47 : vector<7x1x17xi32>
    %49 = arith.andi %48, %46 : vector<7x1x17xi1>
    %50 = arith.ori %41, %49 : vector<7x1x17xi1>
    %c7_i32 = arith.constant 7 : i32
    %51 = vector.broadcast %c7_i32 : i32 to vector<7x1x17xi32>
    %52 = arith.cmpi eq, %24, %51 : vector<7x1x17xi32>
    %c8_i32 = arith.constant 8 : i32
    %53 = vector.broadcast %c8_i32 : i32 to vector<7x1x17xi32>
    %54 = arith.cmpi eq, %24, %53 : vector<7x1x17xi32>
    %55 = arith.ori %52, %54 : vector<7x1x17xi1>
    %c2_i32_10 = arith.constant 2 : i32
    %56 = vector.broadcast %c2_i32_10 : i32 to vector<7x1x17xi32>
    %57 = arith.cmpi eq, %23, %56 : vector<7x1x17xi32>
    %58 = arith.andi %57, %55 : vector<7x1x17xi1>
    %59 = arith.ori %50, %58 : vector<7x1x17xi1>
    %c9_i32 = arith.constant 9 : i32
    %60 = vector.broadcast %c9_i32 : i32 to vector<7x1x17xi32>
    %61 = arith.cmpi eq, %24, %60 : vector<7x1x17xi32>
    %c10_i32 = arith.constant 10 : i32
    %62 = vector.broadcast %c10_i32 : i32 to vector<7x1x17xi32>
    %63 = arith.cmpi eq, %24, %62 : vector<7x1x17xi32>
    %64 = arith.ori %61, %63 : vector<7x1x17xi1>
    %c3_i32_11 = arith.constant 3 : i32
    %65 = vector.broadcast %c3_i32_11 : i32 to vector<7x1x17xi32>
    %66 = arith.cmpi eq, %23, %65 : vector<7x1x17xi32>
    %67 = arith.andi %66, %64 : vector<7x1x17xi1>
    %68 = arith.ori %59, %67 : vector<7x1x17xi1>
    %c11_i32 = arith.constant 11 : i32
    %69 = vector.broadcast %c11_i32 : i32 to vector<7x1x17xi32>
    %70 = arith.cmpi eq, %24, %69 : vector<7x1x17xi32>
    %c12_i32 = arith.constant 12 : i32
    %71 = vector.broadcast %c12_i32 : i32 to vector<7x1x17xi32>
    %72 = arith.cmpi eq, %24, %71 : vector<7x1x17xi32>
    %73 = arith.ori %70, %72 : vector<7x1x17xi1>
    %c4_i32_12 = arith.constant 4 : i32
    %74 = vector.broadcast %c4_i32_12 : i32 to vector<7x1x17xi32>
    %75 = arith.cmpi eq, %23, %74 : vector<7x1x17xi32>
    %76 = arith.andi %75, %73 : vector<7x1x17xi1>
    %77 = arith.ori %68, %76 : vector<7x1x17xi1>
    %c13_i32 = arith.constant 13 : i32
    %78 = vector.broadcast %c13_i32 : i32 to vector<7x1x17xi32>
    %79 = arith.cmpi eq, %24, %78 : vector<7x1x17xi32>
    %c14_i32 = arith.constant 14 : i32
    %80 = vector.broadcast %c14_i32 : i32 to vector<7x1x17xi32>
    %81 = arith.cmpi eq, %24, %80 : vector<7x1x17xi32>
    %82 = arith.ori %79, %81 : vector<7x1x17xi1>
    %c5_i32_13 = arith.constant 5 : i32
    %83 = vector.broadcast %c5_i32_13 : i32 to vector<7x1x17xi32>
    %84 = arith.cmpi eq, %23, %83 : vector<7x1x17xi32>
    %85 = arith.andi %84, %82 : vector<7x1x17xi1>
    %86 = arith.ori %77, %85 : vector<7x1x17xi1>
    %c15_i32 = arith.constant 15 : i32
    %87 = vector.broadcast %c15_i32 : i32 to vector<7x1x17xi32>
    %88 = arith.cmpi eq, %24, %87 : vector<7x1x17xi32>
    %c16_i32 = arith.constant 16 : i32
    %89 = vector.broadcast %c16_i32 : i32 to vector<7x1x17xi32>
    %90 = arith.cmpi eq, %24, %89 : vector<7x1x17xi32>
    %91 = arith.ori %88, %90 : vector<7x1x17xi1>
    %c6_i32_14 = arith.constant 6 : i32
    %92 = vector.broadcast %c6_i32_14 : i32 to vector<7x1x17xi32>
    %93 = arith.cmpi eq, %23, %92 : vector<7x1x17xi32>
    %94 = arith.andi %93, %91 : vector<7x1x17xi1>
    %95 = arith.ori %86, %94 : vector<7x1x17xi1>
    %cst_15 = arith.constant 0xFF800000 : f32
    %96 = vector.shape_cast %95 : vector<7x1x17xi1> to vector<7x1x17xi1>
    %97 = vector.broadcast %96 : vector<7x1x17xi1> to vector<7x2x17xi1>
    %98 = vector.shape_cast %17 : vector<1x2x17xf32> to vector<1x2x17xf32>
    %99 = vector.broadcast %98 : vector<1x2x17xf32> to vector<7x2x17xf32>
    %100 = vector.broadcast %cst_15 : f32 to vector<7x2x17xf32>
    %101 = arith.select %97, %99, %100 : vector<7x2x17xi1>, vector<7x2x17xf32>
    %cst_16 = arith.constant dense<0xFF800000> : vector<7x2xf32>
    %102 = vector.multi_reduction <maximumf>, %101, %cst_16 [2] : vector<7x2x17xf32> to vector<7x2xf32>
    %cst_17 = arith.constant 0x7F800000 : f32
    %103 = vector.shape_cast %95 : vector<7x1x17xi1> to vector<7x1x17xi1>
    %104 = vector.broadcast %103 : vector<7x1x17xi1> to vector<7x2x17xi1>
    %105 = vector.shape_cast %19 : vector<1x2x17xf32> to vector<1x2x17xf32>
    %106 = vector.broadcast %105 : vector<1x2x17xf32> to vector<7x2x17xf32>
    %107 = vector.broadcast %cst_17 : f32 to vector<7x2x17xf32>
    %108 = arith.select %104, %106, %107 : vector<7x2x17xi1>, vector<7x2x17xf32>
    %cst_18 = arith.constant dense<0x7F800000> : vector<7x2xf32>
    %109 = vector.multi_reduction <minimumf>, %108, %cst_18 [2] : vector<7x2x17xf32> to vector<7x2xf32>
    %110 = vector.broadcast %21 : vector<1x2xf32> to vector<7x2xf32>
    %111 = arith.subf %102, %110 : vector<7x2xf32>
    %112 = vector.broadcast %22 : vector<1x2xf32> to vector<7x2xf32>
    %113 = arith.divf %111, %112 : vector<7x2xf32>
    %cst_19 = arith.constant 6.400000e+01 : f32
    %114 = vector.broadcast %cst_19 : f32 to vector<7x2xf32>
    %115 = arith.mulf %113, %114 : vector<7x2xf32>
    %116 = math.ceil %115 : vector<7x2xf32>
    %117 = arith.fptosi %116 : vector<7x2xf32> to vector<7x2xi32>
    %118 = vector.broadcast %21 : vector<1x2xf32> to vector<7x2xf32>
    %119 = arith.subf %109, %118 : vector<7x2xf32>
    %120 = vector.broadcast %22 : vector<1x2xf32> to vector<7x2xf32>
    %121 = arith.divf %119, %120 : vector<7x2xf32>
    %cst_20 = arith.constant 6.400000e+01 : f32
    %122 = vector.broadcast %cst_20 : f32 to vector<7x2xf32>
    %123 = arith.mulf %121, %122 : vector<7x2xf32>
    %124 = math.floor %123 : vector<7x2xf32>
    %125 = arith.fptosi %124 : vector<7x2xf32> to vector<7x2xi32>
    %126 = tpu.iota {dimensions = array<i32: 0>} : vector<7x2xi32>
    %c1_i32_21 = arith.constant 1 : i32
    %127 = vector.broadcast %c1_i32_21 : i32 to vector<7x2xi32>
    %128 = arith.addi %126, %127 : vector<7x2xi32>
    %c9_i32_22 = arith.constant 9 : i32
    %129 = vector.broadcast %c9_i32_22 : i32 to vector<7x2xi32>
    %130 = arith.muli %128, %129 : vector<7x2xi32>
    %c9_i32_23 = arith.constant 9 : i32
    %131 = vector.broadcast %c9_i32_23 : i32 to vector<7x2xi32>
    %132 = arith.muli %126, %131 : vector<7x2xi32>
    %133 = arith.cmpi sle, %117, %125 : vector<7x2xi32>
    %134 = arith.subi %117, %125 : vector<7x2xi32>
    %c30_i32 = arith.constant 30 : i32
    %135 = vector.broadcast %c30_i32 : i32 to vector<7x2xi32>
    %136 = arith.cmpi sgt, %134, %135 : vector<7x2xi32>
    %137 = arith.ori %133, %136 : vector<7x2xi1>
    %138 = arith.select %137, %130, %117 : vector<7x2xi1>, vector<7x2xi32>
    %c0_24 = arith.constant 0 : index
    %c0_25 = arith.constant 0 : index
    %139 = vector.load %arg2[%c0_24, %c0_25] : memref<7x2xi32, #tpu.memory_space<vmem>>, vector<7x2xi32>
    tpu.vector_store %arg2[%c0_24, %c0_25], %138 {strides = array<i32>} : memref<7x2xi32, #tpu.memory_space<vmem>>, vector<7x2xi32>,
    %140 = arith.select %137, %132, %125 : vector<7x2xi1>, vector<7x2xi32>
    %c0_26 = arith.constant 0 : index
    %c0_27 = arith.constant 0 : index
    %141 = vector.load %arg3[%c0_26, %c0_27] : memref<7x2xi32, #tpu.memory_space<vmem>>, vector<7x2xi32>
    tpu.vector_store %arg3[%c0_26, %c0_27], %140 {strides = array<i32>} : memref<7x2xi32, #tpu.memory_space<vmem>>, vector<7x2xi32>,
    return
  }
  func.func @transform_0(%arg0: i32) -> (i32, i32, i32, i32) {
    %c1_i32 = arith.constant 1 : i32
    %c0_i32 = arith.constant 0 : i32
    %c0_i32_0 = arith.constant 0 : i32
    %c0_i32_1 = arith.constant 0 : i32
    return %arg0, %c1_i32, %c0_i32, %c0_i32_0 : i32, i32, i32, i32
  }
  func.func @transform_1(%arg0: i32) -> (i32, i32) {
    %c0_i32 = arith.constant 0 : i32
    %c0_i32_0 = arith.constant 0 : i32
    return %c0_i32, %arg0 : i32, i32
  }
  func.func @transform_2(%arg0: i32) -> (i32, i32) {
    %c0_i32 = arith.constant 0 : i32
    %c0_i32_0 = arith.constant 0 : i32
    return %c0_i32, %arg0 : i32, i32
  }
}

</mosaic_0001>

<llo_original>
// kernel: tpu_custom_call.1
$region0: #{tpu_custom_call.1}
  #allocation0 [shape = 'u32[]', space=smem, size = 0x4, offset = 0x4, fixed_abs, tag = 'smem constant byte address 0x4 - core index']
  #allocation1 [shape = 'u32[144,128]{1,0:T(1,128)}', space=vmem, size = 0x12000, scoped, tag = 'internal scratch']
  #allocation4 [shape = 's32[]', space=sflag, size = 0x4, offset = 0, fixed_abs, tag = 'sflag constant byte address 0x0 - dummy sync flag']
  %s0 = inlined_call_operand.hbm [shape: f32[2,4,16,17], index: 0, kind: input, shape index: {}]
  %s1 = inlined_call_operand.vmem [shape: s32[7,2], index: 1, kind: output, shape index: {0}]
  %s2 = inlined_call_operand.vmem [shape: s32[7,2], index: 2, kind: output, shape index: {1}]
  %3 = xla_tuple %s1, %s2
  %s4 = sld [smem:[#allocation0]]
  $region26: #{tpu_custom_call.1} parent=0
    _
  %s6 = ssub.s32 1, %s4
  %s7 = scalar_select 0, %s6, %s4
  $region1: #{tpu_custom_call.1} parent=0
    #allocation2 [shape = 'u8[16384]{0}', space=vmem, size = 0x4000, scoped, tag = 'input window, operand 0, single buffered']
    #allocation3 [shape = 's32[1]{0}', space=sflag, size = 0x4, scoped, tag = 'scoped memory for tpu_custom_call.1']
    %8 = vsyncpa [#allocation3], 0
    // Predicated region
    $region2: #{tpu_custom_call.1} parent=1 // pred_check
      _
    $region3: #{tpu_custom_call.1} parent=1 // pred_check_branch
      %10 = sbr.rel (0) target = $region5
    $region4: #{tpu_custom_call.1} parent=1 // pred_region
      #allocation5 [shape = 'u32[6]{0}', space=smem, size = 0x18, scoped, tag = 'DMA stride descriptor']
      %s12 = ssub.s32 512, 512
      %13 = vsyncadd [#allocation3], %s12
      %s14 = scalar_lea.hbm %s0, 256
      %s16 = sshll.u32 1, 14
      %s17 = sxor.u32 4294967295, %s16
      %s19 = sld [smem:[#allocation0]]
      %s20 = sadd.s32 2, %s19
      %s22 = sshll.u32 7, 26
      %s23 = sxor.u32 4294967295, %s22
      %s24 = sand.u32 0, %s23
      %s25 = sshll.u32 %s20, 26
      %s26 = sor.u32 %s24, %s25
      %s27 = sshll.u32 [#allocation2], 4
      %s28 = int_to_ptr.vmem [resolvable:$true] %s27
      %34 = sst [smem:[#allocation5]] 1024
      %s35 = scalar_lea.smem [#allocation5], 1
      %36 = sst [smem:[%s35]] 256
      %s37 = scalar_lea.smem [#allocation5], 2
      %38 = sst [smem:[%s37]] 2
      %s39 = scalar_lea.smem [#allocation5], 3
      %40 = sst [smem:[%s39]] 128
      %s41 = scalar_lea.smem [#allocation5], 4
      %42 = sst [smem:[%s41]] 128
      %s43 = scalar_lea.smem [#allocation5], 5
      %44 = sst [smem:[%s43]] 8
      %46 = dma.general %s14, 512, %s28, [#allocation3], [#allocation4], [#allocation5], %s26, 0
    $region5: #{tpu_custom_call.1} parent=1 // pred_fallthru
      _
    // Predicated region
    $region6: #{tpu_custom_call.1} parent=1 // pred_check
      _
    $region7: #{tpu_custom_call.1} parent=1 // pred_check_branch
      %48 = sbr.rel (0) target = $region9
    $region8: #{tpu_custom_call.1} parent=1 // pred_region
      %49 = dma.done [#allocation3], 512
    $region9: #{tpu_custom_call.1} parent=1 // pred_fallthru
      _
    %v50 = vld [vmem:[#allocation2] sm:$0xff]
    %v51 = vld [vmem:[#allocation2 + $0x8] sm:$0xff]
    %v52 = vld [vmem:[#allocation2 + $0x10] sm:$0xff]
    %v53 = vld [vmem:[#allocation2 + $0x18] sm:$0xff]
    %55 = vset.pattern.permute.xlu0 0
    %56 = vperm.xlu0 %55, %v50
    %v57 = vpop.permute.xlu0 %56
    %60 = vset.pattern.permute.xlu0 0
    %61 = vperm.xlu0 %60, %v51
    %v62 = vpop.permute.xlu0 %61
    %65 = vset.pattern.permute.xlu0 0
    %66 = vperm.xlu0 %65, %v52
    %v67 = vpop.permute.xlu0 %66
    %70 = vset.pattern.permute.xlu0 0
    %71 = vperm.xlu0 %70, %v53
    %v72 = vpop.permute.xlu0 %71
    %v74 = vsub.f32 %v50, %v57
    %v75 = vsub.f32 %v51, %v62
    %v76 = vsub.f32 %v52, %v67
    %v77 = vsub.f32 %v53, %v72
    %82 = vrot.lane.b32.xlu0 %v74, 127
    %v83 = vpop.permute.xlu0 %82
    %84 = vrot.lane.b32.xlu0 %v75, 127
    %v85 = vpop.permute.xlu0 %84
    %86 = vrot.lane.b32.xlu0 %v76, 127
    %v87 = vpop.permute.xlu0 %86
    %88 = vrot.lane.b32.xlu0 %v77, 127
    %v89 = vpop.permute.xlu0 %88
    %v94 = vadd.f32 %v74, %v83
    %v95 = vadd.f32 %v75, %v85
    %v96 = vadd.f32 %v76, %v87
    %v97 = vadd.f32 %v77, %v89
    %v98 = vmul.f32 %v94, 0.5
    %v99 = vmul.f32 %v95, 0.5
    %v100 = vmul.f32 %v96, 0.5
    %v101 = vmul.f32 %v97, 0.5
    %103 = vset.pattern.permute.xlu0 5
    %104 = vperm.xlu0 %103, %v98
    %v105 = vpop.permute.xlu0 %104
    %108 = vset.pattern.permute.xlu0 5
    %109 = vperm.xlu0 %108, %v99
    %v110 = vpop.permute.xlu0 %109
    %113 = vset.pattern.permute.xlu0 5
    %114 = vperm.xlu0 %113, %v100
    %v115 = vpop.permute.xlu0 %114
    %118 = vset.pattern.permute.xlu0 5
    %119 = vperm.xlu0 %118, %v101
    %v120 = vpop.permute.xlu0 %119
    %v122 = vrcp.pop %v105
    %v123 = vmul.f32 %v74, %v122
    %v124 = vrcp.pop %v110
    %v125 = vmul.f32 %v75, %v124
    %v126 = vrcp.pop %v115
    %v127 = vmul.f32 %v76, %v126
    %v128 = vrcp.pop %v120
    %v129 = vmul.f32 %v77, %v128
    %vm130 = vcmask 138240
    %v131 = vsel %vm130, %v123, inf
    %132 = vmin.xlane.f32.xlu0 %v131
    %v133 = vpop.xlane.xlu0 %132
    %v134 = vsel %vm130, %v125, inf
    %135 = vmin.xlane.f32.xlu0 %v134
    %v136 = vpop.xlane.xlu0 %135
    %v137 = vsel %vm130, %v127, inf
    %138 = vmin.xlane.f32.xlu0 %v137
    %v139 = vpop.xlane.xlu0 %138
    %v140 = vsel %vm130, %v129, inf
    %141 = vmin.xlane.f32.xlu0 %v140
    %v142 = vpop.xlane.xlu0 %141
    %v143 = vsub.f32 %v123, %v133
    %v144 = vsub.f32 %v125, %v136
    %v145 = vsub.f32 %v127, %v139
    %v146 = vsub.f32 %v129, %v142
    %v147 = vsel %vm130, %v143, -inf
    %v148 = vsel %vm130, %v144, -inf
    %v149 = vmax.f32 %v147, %v148
    %v150 = vrot.slane %v149, 4
    %v151 = vmax.f32 %v149, %v150
    %v152 = vrot.slane %v151, 2
    %v153 = vmax.f32 %v151, %v152
    %v154 = vrot.slane %v153, 1
    %v155 = vmax.f32 %v153, %v154
    %v156 = vsel %vm130, %v145, -inf
    %v157 = vsel %vm130, %v146, -inf
    %v158 = vmax.f32 %v156, %v157
    %v159 = vrot.slane %v158, 4
    %v160 = vmax.f32 %v158, %v159
    %v161 = vrot.slane %v160, 2
    %v162 = vmax.f32 %v160, %v161
    %v163 = vrot.slane %v162, 1
    %v164 = vmax.f32 %v162, %v163
    %v165 = vsel %vm130, %v143, inf
    %v166 = vsel %vm130, %v144, inf
    %v167 = vmin.f32 %v165, %v166
    %v168 = vrot.slane %v167, 4
    %v169 = vmin.f32 %v167, %v168
    %v170 = vrot.slane %v169, 2
    %v171 = vmin.f32 %v169, %v170
    %v172 = vrot.slane %v171, 1
    %v173 = vmin.f32 %v171, %v172
    %v174 = vsel %vm130, %v145, inf
    %v175 = vsel %vm130, %v146, inf
    %v176 = vmin.f32 %v174, %v175
    %v177 = vrot.slane %v176, 4
    %v178 = vmin.f32 %v176, %v177
    %v179 = vrot.slane %v178, 2
    %v180 = vmin.f32 %v178, %v179
    %v181 = vrot.slane %v180, 1
    %v182 = vmin.f32 %v180, %v181
    %vm185 = vcmask 1041409
    %v186 = vsel %vm185, %v164, %v155
    %vm188 = vcmask 132096
    %v189 = vsel %vm188, %v186, -inf
    %190 = vmax.xlane.f32.xlu0 %v189
    %v191 = vpop.xlane.xlu0 %190
    %v194 = vsel %vm185, %v182, %v173
    %v196 = vsel %vm188, %v194, inf
    %197 = vmin.xlane.f32.xlu0 %v196
    %v198 = vpop.xlane.xlu0 %197
    %v199 = vsub.f32 %v191, %v198
    %v200 = vlaneseq
    %v201 = vand.u32 %v200, 127
    %vm202 = vcmp.eq.s32.totalorder %v201, 0
    %vm203 = vcmp.eq.s32.totalorder %v201, 1
    %vm204 = vmor %vm202, %vm203
    %vm205 = vcmp.eq.s32.totalorder %v201, 2
    %vm206 = vmor %vm204, %vm205
    %vm207 = vcmp.eq.s32.totalorder %v201, 3
    %vm208 = vmor %vm206, %vm207
    %vm209 = vcmp.eq.s32.totalorder %v201, 4
    %vm210 = vmor %vm208, %vm209
    %vm211 = vmand 1, %vm210
    %vm212 = vmand 0, %vm210
    %vm213 = vcmp.eq.s32.totalorder %v201, 5
    %vm214 = vcmp.eq.s32.totalorder %v201, 6
    %vm215 = vmor %vm213, %vm214
    %vm216 = vmand 0, %vm215
    %vm217 = vmand 1, %vm215
    %vm218 = vmor %vm211, %vm216
    %vm219 = vmor %vm212, %vm217
    %vm220 = vmor %vm212, %vm216
    %vm221 = vcmp.eq.s32.totalorder %v201, 7
    %vm222 = vcmp.eq.s32.totalorder %v201, 8
    %vm223 = vmor %vm221, %vm222
    %vm224 = vmand 0, %vm223
    %vm225 = vmand 1, %vm223
    %vm226 = vmor %vm218, %vm224
    %vm227 = vmor %vm219, %vm224
    %vm228 = vmor %vm220, %vm225
    %vm229 = vmor %vm220, %vm224
    %vm230 = vcmp.eq.s32.totalorder %v201, 9
    %vm231 = vcmp.eq.s32.totalorder %v201, 10
    %vm232 = vmor %vm230, %vm231
    %vm233 = vmand 0, %vm232
    %vm234 = vmand 1, %vm232
    %vm235 = vmor %vm226, %vm233
    %vm236 = vmor %vm227, %vm233
    %vm237 = vmor %vm228, %vm233
    %vm238 = vmor %vm229, %vm234
    %vm239 = vmor %vm229, %vm233
    %vm240 = vcmp.eq.s32.totalorder %v201, 11
    %vm241 = vcmp.eq.s32.totalorder %v201, 12
    %vm242 = vmor %vm240, %vm241
    %vm243 = vmand 0, %vm242
    %vm244 = vmand 1, %vm242
    %vm245 = vmor %vm235, %vm243
    %vm246 = vmor %vm236, %vm243
    %vm247 = vmor %vm237, %vm243
    %vm248 = vmor %vm238, %vm243
    %vm249 = vmor %vm239, %vm244
    %vm250 = vmor %vm239, %vm243
    %vm251 = vcmp.eq.s32.totalorder %v201, 13
    %vm252 = vcmp.eq.s32.totalorder %v201, 14
    %vm253 = vmor %vm251, %vm252
    %vm254 = vmand 0, %vm253
    %vm255 = vmand 1, %vm253
    %vm256 = vmor %vm245, %vm254
    %vm257 = vmor %vm246, %vm254
    %vm258 = vmor %vm247, %vm254
    %vm259 = vmor %vm248, %vm254
    %vm260 = vmor %vm249, %vm254
    %vm261 = vmor %vm250, %vm255
    %vm262 = vmor %vm250, %vm254
    %vm263 = vcmp.eq.s32.totalorder %v201, 15
    %vm264 = vcmp.eq.s32.totalorder %v201, 16
    %vm265 = vmor %vm263, %vm264
    %vm266 = vmand 0, %vm265
    %vm267 = vmand 1, %vm265
    %vm268 = vmor %vm256, %vm266
    %vm269 = vmor %vm257, %vm266
    %vm270 = vmor %vm258, %vm266
    %vm271 = vmor %vm259, %vm266
    %vm272 = vmor %vm260, %vm266
    %vm273 = vmor %vm261, %vm266
    %vm274 = vmor %vm262, %vm267
    %v275 = vsel %vm268, 1, 0
    %v276 = vsel %vm269, 1, 0
    %v277 = vsel %vm270, 1, 0
    %v278 = vsel %vm271, 1, 0
    %v279 = vsel %vm272, 1, 0
    %v280 = vsel %vm273, 1, 0
    %v281 = vsel %vm274, 1, 0
    %vm282 = vcmp.eq.s32.totalorder %v275, 1
    %vm283 = vcmp.eq.s32.totalorder %v276, 1
    %vm284 = vcmp.eq.s32.totalorder %v277, 1
    %vm285 = vcmp.eq.s32.totalorder %v278, 1
    %vm286 = vcmp.eq.s32.totalorder %v279, 1
    %vm287 = vcmp.eq.s32.totalorder %v280, 1
    %vm288 = vcmp.eq.s32.totalorder %v281, 1
    %v289 = vsel %vm282, %v186, -inf
    %v290 = vsel %vm283, %v186, -inf
    %v291 = vsel %vm284, %v186, -inf
    %v292 = vsel %vm285, %v186, -inf
    %v293 = vsel %vm286, %v186, -inf
    %v294 = vsel %vm287, %v186, -inf
    %v295 = vsel %vm288, %v186, -inf
    %v296 = vsel %vm188, %v289, -inf
    %297 = vmax.xlane.f32.xlu0 %v296
    %v298 = vpop.xlane.xlu0 %297
    %v299 = vsel %vm188, %v290, -inf
    %300 = vmax.xlane.f32.xlu0 %v299
    %v301 = vpop.xlane.xlu0 %300
    %v302 = vsel %vm188, %v291, -inf
    %303 = vmax.xlane.f32.xlu0 %v302
    %v304 = vpop.xlane.xlu0 %303
    %v305 = vsel %vm188, %v292, -inf
    %306 = vmax.xlane.f32.xlu0 %v305
    %v307 = vpop.xlane.xlu0 %306
    %v308 = vsel %vm188, %v293, -inf
    %309 = vmax.xlane.f32.xlu0 %v308
    %v310 = vpop.xlane.xlu0 %309
    %v311 = vsel %vm188, %v294, -inf
    %312 = vmax.xlane.f32.xlu0 %v311
    %v313 = vpop.xlane.xlu0 %312
    %v314 = vsel %vm188, %v295, -inf
    %315 = vmax.xlane.f32.xlu0 %v314
    %v316 = vpop.xlane.xlu0 %315
    %v317 = vsel %vm282, %v194, inf
    %v318 = vsel %vm283, %v194, inf
    %v319 = vsel %vm284, %v194, inf
    %v320 = vsel %vm285, %v194, inf
    %v321 = vsel %vm286, %v194, inf
    %v322 = vsel %vm287, %v194, inf
    %v323 = vsel %vm288, %v194, inf
    %v324 = vsel %vm188, %v317, inf
    %325 = vmin.xlane.f32.xlu0 %v324
    %v326 = vpop.xlane.xlu0 %325
    %v327 = vsel %vm188, %v318, inf
    %328 = vmin.xlane.f32.xlu0 %v327
    %v329 = vpop.xlane.xlu0 %328
    %v330 = vsel %vm188, %v319, inf
    %331 = vmin.xlane.f32.xlu0 %v330
    %v332 = vpop.xlane.xlu0 %331
    %v333 = vsel %vm188, %v320, inf
    %334 = vmin.xlane.f32.xlu0 %v333
    %v335 = vpop.xlane.xlu0 %334
    %v336 = vsel %vm188, %v321, inf
    %337 = vmin.xlane.f32.xlu0 %v336
    %v338 = vpop.xlane.xlu0 %337
    %v339 = vsel %vm188, %v322, inf
    %340 = vmin.xlane.f32.xlu0 %v339
    %v341 = vpop.xlane.xlu0 %340
    %v342 = vsel %vm188, %v323, inf
    %343 = vmin.xlane.f32.xlu0 %v342
    %v344 = vpop.xlane.xlu0 %343
    %v345 = vsub.f32 %v298, %v198
    %v346 = vsub.f32 %v301, %v198
    %v347 = vsub.f32 %v304, %v198
    %v348 = vsub.f32 %v307, %v198
    %v349 = vsub.f32 %v310, %v198
    %v350 = vsub.f32 %v313, %v198
    %v351 = vsub.f32 %v316, %v198
    %v352 = vrcp.pop %v199
    %v353 = vmul.f32 %v345, %v352
    %v354 = vmul.f32 %v346, %v352
    %v355 = vmul.f32 %v347, %v352
    %v356 = vmul.f32 %v348, %v352
    %v357 = vmul.f32 %v349, %v352
    %v358 = vmul.f32 %v350, %v352
    %v359 = vmul.f32 %v351, %v352
    %v360 = vmul.f32 %v353, 64.0
    %v361 = vmul.f32 %v354, 64.0
    %v362 = vmul.f32 %v355, 64.0
    %v363 = vmul.f32 %v356, 64.0
    %v364 = vmul.f32 %v357, 64.0
    %v365 = vmul.f32 %v358, 64.0
    %v366 = vmul.f32 %v359, 64.0
    %v367 = vceil.f32 %v360
    %v368 = vceil.f32 %v361
    %v369 = vceil.f32 %v362
    %v370 = vceil.f32 %v363
    %v371 = vceil.f32 %v364
    %v372 = vceil.f32 %v365
    %v373 = vceil.f32 %v366
    %v374 = vcvt.f32.s32.to.zero.pseudo %v367
    %v375 = vcvt.f32.s32.to.zero.pseudo %v368
    %v376 = vcvt.f32.s32.to.zero.pseudo %v369
    %v377 = vcvt.f32.s32.to.zero.pseudo %v370
    %v378 = vcvt.f32.s32.to.zero.pseudo %v371
    %v379 = vcvt.f32.s32.to.zero.pseudo %v372
    %v380 = vcvt.f32.s32.to.zero.pseudo %v373
    %v381 = vsub.f32 %v326, %v198
    %v382 = vsub.f32 %v329, %v198
    %v383 = vsub.f32 %v332, %v198
    %v384 = vsub.f32 %v335, %v198
    %v385 = vsub.f32 %v338, %v198
    %v386 = vsub.f32 %v341, %v198
    %v387 = vsub.f32 %v344, %v198
    %v388 = vmul.f32 %v381, %v352
    %v389 = vmul.f32 %v382, %v352
    %v390 = vmul.f32 %v383, %v352
    %v391 = vmul.f32 %v384, %v352
    %v392 = vmul.f32 %v385, %v352
    %v393 = vmul.f32 %v386, %v352
    %v394 = vmul.f32 %v387, %v352
    %v395 = vmul.f32 %v388, 64.0
    %v396 = vmul.f32 %v389, 64.0
    %v397 = vmul.f32 %v390, 64.0
    %v398 = vmul.f32 %v391, 64.0
    %v399 = vmul.f32 %v392, 64.0
    %v400 = vmul.f32 %v393, 64.0
    %v401 = vmul.f32 %v394, 64.0
    %v402 = vfloor.f32 %v395
    %v403 = vfloor.f32 %v396
    %v404 = vfloor.f32 %v397
    %v405 = vfloor.f32 %v398
    %v406 = vfloor.f32 %v399
    %v407 = vfloor.f32 %v400
    %v408 = vfloor.f32 %v401
    %v409 = vcvt.f32.s32.to.zero.pseudo %v402
    %v410 = vcvt.f32.s32.to.zero.pseudo %v403
    %v411 = vcvt.f32.s32.to.zero.pseudo %v404
    %v412 = vcvt.f32.s32.to.zero.pseudo %v405
    %v413 = vcvt.f32.s32.to.zero.pseudo %v406
    %v414 = vcvt.f32.s32.to.zero.pseudo %v407
    %v415 = vcvt.f32.s32.to.zero.pseudo %v408
    %v416 = vlaneseq
    %v417 = vshrl.u32 %v416, 7
    %v418 = vadd.s32 %v417, 1
    %v419 = vmul.u32 %v418, 9
    %v420 = vmul.u32 %v417, 9
    %vm421 = vcmp.le.s32.totalorder %v374, %v409
    %vm422 = vcmp.le.s32.totalorder %v375, %v410
    %vm423 = vcmp.le.s32.totalorder %v376, %v411
    %vm424 = vcmp.le.s32.totalorder %v377, %v412
    %vm425 = vcmp.le.s32.totalorder %v378, %v413
    %vm426 = vcmp.le.s32.totalorder %v379, %v414
    %vm427 = vcmp.le.s32.totalorder %v380, %v415
    %v428 = vsub.s32 %v374, %v409
    %v429 = vsub.s32 %v375, %v410
    %v430 = vsub.s32 %v376, %v411
    %v431 = vsub.s32 %v377, %v412
    %v432 = vsub.s32 %v378, %v413
    %v433 = vsub.s32 %v379, %v414
    %v434 = vsub.s32 %v380, %v415
    %vm435 = vcmp.gt.s32.totalorder %v428, 30
    %vm436 = vcmp.gt.s32.totalorder %v429, 30
    %vm437 = vcmp.gt.s32.totalorder %v430, 30
    %vm438 = vcmp.gt.s32.totalorder %v431, 30
    %vm439 = vcmp.gt.s32.totalorder %v432, 30
    %vm440 = vcmp.gt.s32.totalorder %v433, 30
    %vm441 = vcmp.gt.s32.totalorder %v434, 30
    %vm442 = vmor %vm421, %vm435
    %vm443 = vmor %vm422, %vm436
    %vm444 = vmor %vm423, %vm437
    %vm445 = vmor %vm424, %vm438
    %vm446 = vmor %vm425, %vm439
    %vm447 = vmor %vm426, %vm440
    %vm448 = vmor %vm427, %vm441
    %v449 = vlaneseq
    %v450 = vshrl.u32 %v449, 7
    %v451 = vsub.s32 0, %v450
    %v452 = vrot.slane %v419, %v451
    %v453 = vlaneseq
    %v454 = vshrl.u32 %v453, 7
    %v455 = vsub.s32 1, %v454
    %v456 = vrot.slane %v419, %v455
    %v457 = vlaneseq
    %v458 = vshrl.u32 %v457, 7
    %v459 = vsub.s32 2, %v458
    %v460 = vrot.slane %v419, %v459
    %v461 = vlaneseq
    %v462 = vshrl.u32 %v461, 7
    %v463 = vsub.s32 3, %v462
    %v464 = vrot.slane %v419, %v463
    %v465 = vlaneseq
    %v466 = vshrl.u32 %v465, 7
    %v467 = vsub.s32 4, %v466
    %v468 = vrot.slane %v419, %v467
    %v469 = vlaneseq
    %v470 = vshrl.u32 %v469, 7
    %v471 = vsub.s32 5, %v470
    %v472 = vrot.slane %v419, %v471
    %v473 = vlaneseq
    %v474 = vshrl.u32 %v473, 7
    %v475 = vsub.s32 6, %v474
    %v476 = vrot.slane %v419, %v475
    %v477 = vsel %vm442, %v452, %v374
    %v478 = vsel %vm443, %v456, %v375
    %v479 = vsel %vm444, %v460, %v376
    %v480 = vsel %vm445, %v464, %v377
    %v481 = vsel %vm446, %v468, %v378
    %v482 = vsel %vm447, %v472, %v379
    %v483 = vsel %vm448, %v476, %v380
    %484 = vset.pattern.permute.xlu0 0
    %485 = vperm.xlu0 %484, %v477
    %v486 = vpop.permute.xlu0 %485
    %487 = vset.pattern.permute.xlu0 0
    %488 = vperm.xlu0 %487, %v478
    %v489 = vpop.permute.xlu0 %488
    %490 = vset.pattern.permute.xlu0 0
    %491 = vperm.xlu0 %490, %v479
    %v492 = vpop.permute.xlu0 %491
    %493 = vset.pattern.permute.xlu0 0
    %494 = vperm.xlu0 %493, %v480
    %v495 = vpop.permute.xlu0 %494
    %496 = vset.pattern.permute.xlu0 0
    %497 = vperm.xlu0 %496, %v481
    %v498 = vpop.permute.xlu0 %497
    %499 = vset.pattern.permute.xlu0 0
    %500 = vperm.xlu0 %499, %v482
    %v501 = vpop.permute.xlu0 %500
    %502 = vset.pattern.permute.xlu0 0
    %503 = vperm.xlu0 %502, %v483
    %v504 = vpop.permute.xlu0 %503
    %v505 = vlaneseq
    %v506 = vshrl.u32 %v505, 7
    %v507 = vsub.s32 %v201, %v506
    %v508 = vrot.slane %v486, %v507
    %v509 = vlaneseq
    %v510 = vshrl.u32 %v509, 7
    %v511 = vsub.s32 %v201, %v510
    %v512 = vrot.slane %v489, %v511
    %v513 = vlaneseq
    %v514 = vshrl.u32 %v513, 7
    %v515 = vsub.s32 %v201, %v514
    %v516 = vrot.slane %v492, %v515
    %v517 = vlaneseq
    %v518 = vshrl.u32 %v517, 7
    %v519 = vsub.s32 %v201, %v518
    %v520 = vrot.slane %v495, %v519
    %v521 = vlaneseq
    %v522 = vshrl.u32 %v521, 7
    %v523 = vsub.s32 %v201, %v522
    %v524 = vrot.slane %v498, %v523
    %v525 = vlaneseq
    %v526 = vshrl.u32 %v525, 7
    %v527 = vsub.s32 %v201, %v526
    %v528 = vrot.slane %v501, %v527
    %v529 = vlaneseq
    %v530 = vshrl.u32 %v529, 7
    %v531 = vsub.s32 %v201, %v530
    %v532 = vrot.slane %v504, %v531
    %v533 = vsel %vm185, %v512, %v508
    %vm534 = vcmask 1042434
    %v535 = vsel %vm534, %v516, %v533
    %vm536 = vcmask 1043459
    %v537 = vsel %vm536, %v520, %v535
    %vm538 = vcmask 1044484
    %v539 = vsel %vm538, %v524, %v537
    %vm540 = vcmask 1045509
    %v541 = vsel %vm540, %v528, %v539
    %vm542 = vcmask 1046534
    %v543 = vsel %vm542, %v532, %v541
    %vm544 = vcmask 14336
    %545 = vst.msk [vmem:[%s1] sm:$0x7f] %vm544, %v543
    %v546 = vlaneseq
    %v547 = vshrl.u32 %v546, 7
    %v548 = vsub.s32 0, %v547
    %v549 = vrot.slane %v420, %v548
    %v550 = vlaneseq
    %v551 = vshrl.u32 %v550, 7
    %v552 = vsub.s32 1, %v551
    %v553 = vrot.slane %v420, %v552
    %v554 = vlaneseq
    %v555 = vshrl.u32 %v554, 7
    %v556 = vsub.s32 2, %v555
    %v557 = vrot.slane %v420, %v556
    %v558 = vlaneseq
    %v559 = vshrl.u32 %v558, 7
    %v560 = vsub.s32 3, %v559
    %v561 = vrot.slane %v420, %v560
    %v562 = vlaneseq
    %v563 = vshrl.u32 %v562, 7
    %v564 = vsub.s32 4, %v563
    %v565 = vrot.slane %v420, %v564
    %v566 = vlaneseq
    %v567 = vshrl.u32 %v566, 7
    %v568 = vsub.s32 5, %v567
    %v569 = vrot.slane %v420, %v568
    %v570 = vlaneseq
    %v571 = vshrl.u32 %v570, 7
    %v572 = vsub.s32 6, %v571
    %v573 = vrot.slane %v420, %v572
    %v574 = vsel %vm442, %v549, %v409
    %v575 = vsel %vm443, %v553, %v410
    %v576 = vsel %vm444, %v557, %v411
    %v577 = vsel %vm445, %v561, %v412
    %v578 = vsel %vm446, %v565, %v413
    %v579 = vsel %vm447, %v569, %v414
    %v580 = vsel %vm448, %v573, %v415
    %581 = vset.pattern.permute.xlu0 0
    %582 = vperm.xlu0 %581, %v574
    %v583 = vpop.permute.xlu0 %582
    %584 = vset.pattern.permute.xlu0 0
    %585 = vperm.xlu0 %584, %v575
    %v586 = vpop.permute.xlu0 %585
    %587 = vset.pattern.permute.xlu0 0
    %588 = vperm.xlu0 %587, %v576
    %v589 = vpop.permute.xlu0 %588
    %590 = vset.pattern.permute.xlu0 0
    %591 = vperm.xlu0 %590, %v577
    %v592 = vpop.permute.xlu0 %591
    %593 = vset.pattern.permute.xlu0 0
    %594 = vperm.xlu0 %593, %v578
    %v595 = vpop.permute.xlu0 %594
    %596 = vset.pattern.permute.xlu0 0
    %597 = vperm.xlu0 %596, %v579
    %v598 = vpop.permute.xlu0 %597
    %599 = vset.pattern.permute.xlu0 0
    %600 = vperm.xlu0 %599, %v580
    %v601 = vpop.permute.xlu0 %600
    %v602 = vlaneseq
    %v603 = vshrl.u32 %v602, 7
    %v604 = vsub.s32 %v201, %v603
    %v605 = vrot.slane %v583, %v604
    %v606 = vlaneseq
    %v607 = vshrl.u32 %v606, 7
    %v608 = vsub.s32 %v201, %v607
    %v609 = vrot.slane %v586, %v608
    %v610 = vlaneseq
    %v611 = vshrl.u32 %v610, 7
    %v612 = vsub.s32 %v201, %v611
    %v613 = vrot.slane %v589, %v612
    %v614 = vlaneseq
    %v615 = vshrl.u32 %v614, 7
    %v616 = vsub.s32 %v201, %v615
    %v617 = vrot.slane %v592, %v616
    %v618 = vlaneseq
    %v619 = vshrl.u32 %v618, 7
    %v620 = vsub.s32 %v201, %v619
    %v621 = vrot.slane %v595, %v620
    %v622 = vlaneseq
    %v623 = vshrl.u32 %v622, 7
    %v624 = vsub.s32 %v201, %v623
    %v625 = vrot.slane %v598, %v624
    %v626 = vlaneseq
    %v627 = vshrl.u32 %v626, 7
    %v628 = vsub.s32 %v201, %v627
    %v629 = vrot.slane %v601, %v628
    %v630 = vsel %vm185, %v609, %v605
    %v631 = vsel %vm534, %v613, %v630
    %v632 = vsel %vm536, %v617, %v631
    %v633 = vsel %vm538, %v621, %v632
    %v634 = vsel %vm540, %v625, %v633
    %v635 = vsel %vm542, %v629, %v634
    %636 = vst.msk [vmem:[%s2] sm:$0x7f] %vm544, %v635
    // Predicated region
    $region10: #{tpu_custom_call.1} parent=1 // pred_check
      _
    $region11: #{tpu_custom_call.1} parent=1 // pred_check_branch
      %638 = sbr.rel (0) target = $region13
    $region12: #{tpu_custom_call.1} parent=1 // pred_region
      _
    $region13: #{tpu_custom_call.1} parent=1 // pred_fallthru
      _
    // Predicated region
    $region14: #{tpu_custom_call.1} parent=1 // pred_check
      _
    $region15: #{tpu_custom_call.1} parent=1 // pred_check_branch
      %640 = sbr.rel (0) target = $region17
    $region16: #{tpu_custom_call.1} parent=1 // pred_region
      _
    $region17: #{tpu_custom_call.1} parent=1 // pred_fallthru
      _
    // Predicated region
    $region18: #{tpu_custom_call.1} parent=1 // pred_check
      _
    $region19: #{tpu_custom_call.1} parent=1 // pred_check_branch
      %642 = sbr.rel (0) target = $region21
    $region20: #{tpu_custom_call.1} parent=1 // pred_region
      _
    $region21: #{tpu_custom_call.1} parent=1 // pred_fallthru
      _
    // Predicated region
    $region22: #{tpu_custom_call.1} parent=1 // pred_check
      _
    $region23: #{tpu_custom_call.1} parent=1 // pred_check_branch
      %644 = sbr.rel (0) target = $region25
    $region24: #{tpu_custom_call.1} parent=1 // pred_region
      _
    $region25: #{tpu_custom_call.1} parent=1 // pred_fallthru
      _
    %645 = vsyncpa [#allocation3], 1

</llo_original>
